<compile_context>
chip_gen: v7x
topology: tpu7x:2x2x1
jax: 0.10.0
libtpu: 0.0.40
codegen_flags: <defaults>
</compile_context>

<pallas_src>
import functools
import math

import jax
import jax.numpy as jnp
from jax.experimental import pallas as pl
from jax.experimental.pallas import tpu as pltpu

NUM_CLASSES = 10
ALPHA = 0.5          # distillation mixing weight (constructor arg)
TAU = 2.0            # distillation temperature   (constructor arg)
LANE = 128


# ------------------------------ kernel helpers ------------------------------ #

def _sum_all(x):
    """Full reduction of a 2-D tile, kept as a (1, 1) tile."""
    return jnp.sum(jnp.sum(x, axis=-1, keepdims=True), axis=0, keepdims=True)


def _log_softmax(x):
    m = jnp.max(x, axis=-1, keepdims=True)
    s = x - m
    return s - jnp.log(jnp.sum(jnp.exp(s), axis=-1, keepdims=True))


def _log_softmax_and_softmax(x):
    """log_softmax and softmax sharing a single exp pass."""
    m = jnp.max(x, axis=-1, keepdims=True)
    s = x - m
    e = jnp.exp(s)
    denom = jnp.sum(e, axis=-1, keepdims=True)
    return s - jnp.log(denom), e / denom


# --------------------------------- kernel ----------------------------------- #

def _loss_kernel(x_ref, out_ref, lab_ref, w_ref, b_ref, loss_ref,
                 base_acc, dist_acc, *, num_classes, tau, alpha,
                 distillation_type, batch):
    """Fused DiscriminationLoss3: teacher fwd + CE + distillation + focal combine."""
    i = pl.program_id(0)
    nb = pl.num_programs(0)

    @pl.when(i == 0)
    def _init():
        base_acc[...] = jnp.zeros_like(base_acc)
        dist_acc[...] = jnp.zeros_like(dist_acc)

    logits = out_ref[...].astype(jnp.float32)               # (TB, C) student logits
    rows, _ = logits.shape
    class_iota = jax.lax.broadcasted_iota(jnp.int32, (rows, num_classes), 1)
    one_hot = (class_iota == lab_ref[...]).astype(jnp.float32)

    # base criterion partial sum: sum_i -log_softmax(logits)[i, label_i]
    # TODO(synk): base_criterion is a constructor-injected callable; plain mean-CE assumed.
    base_acc[...] += _sum_all(one_hot * (-_log_softmax(logits)))

    if distillation_type != "none":
        # teacher forward (linear stand-in head): bf16 MXU operands, f32 accumulate.
        # TODO(synk): real teacher is build_model(teacher_cfg) (external mmaction model).
        x_bf16 = x_ref[...].astype(jnp.bfloat16)            # cast in-kernel, no HBM copy
        teacher = (jnp.dot(x_bf16, w_ref[...], preferred_element_type=jnp.float32)
                   + b_ref[...])[:, :num_classes]           # drop lane-padded classes

        if distillation_type == "soft":
            # closed form: log_softmax(one_hot/tau) = one_hot/tau - log(C-1+e^{1/tau})
            z_soft = math.log((num_classes - 1) + math.exp(1.0 / tau))
            log_p = one_hot * (1.0 / tau) - z_soft
            log_q, q = _log_softmax_and_softmax(teacher * (1.0 / tau))
            # F.kl_div(input=log_p, target=log_q, reduction='sum', log_target=True)
            dist_acc[...] += _sum_all(q * (log_q - log_p))
        else:  # 'hard'
            # CE(one_hot, argmax(teacher)) per row = log(C-1+e) - 1{argmax == label}
            z_hard = math.log((num_classes - 1) + math.e)
            t_idx = jnp.argmax(teacher, axis=-1, keepdims=True).astype(jnp.int32)
            match = (t_idx == lab_ref[...]).astype(jnp.float32)     # (TB, 1)
            dist_acc[...] += rows * z_hard - _sum_all(match)

    @pl.when(i == nb - 1)
    def _finalize():
        base = base_acc[...] * (1.0 / batch)
        if distillation_type == "none":
            loss_ref[...] = base                             # reference early-returns base_loss
        else:
            if distillation_type == "soft":
                dist = dist_acc[...] * (tau * tau / (batch * num_classes))
            else:
                dist = dist_acc[...] * (1.0 / batch)
            pt = jnp.exp(-base)
            one_minus_pt = 1.0 - pt
            focal = jnp.where(one_minus_pt > 0.35,
                              jnp.exp(one_minus_pt) * base,
                              one_minus_pt * one_minus_pt * base)
            loss_ref[...] = focal + dist * alpha


# --------------------------------- wrapper ----------------------------------- #

def _pick_block_rows(batch, max_rows=256):
    """Largest row block <= max_rows that divides the batch (8-aligned when tiled)."""
    if batch <= max_rows:
        return batch
    for tb in range(max_rows, 0, -8):
        if batch % tb == 0:
            return tb
    return batch   # awkward batch size: fall back to a single whole-batch block


def init_params(key, in_features, num_classes=NUM_CLASSES):
    """Stand-in teacher parameters, pre-cast + lane-dense padded for the kernel."""
    c_pad = max(LANE, pl.cdiv(num_classes, LANE) * LANE)
    w = (jax.random.normal(key, (in_features, num_classes), jnp.float32)
         * (1.0 / in_features) ** 0.5)
    w_pad = jnp.zeros((in_features, c_pad), jnp.bfloat16)
    w_pad = w_pad.at[:, :num_classes].set(w.astype(jnp.bfloat16))
    return {"teacher_w": w_pad,                               # (D, 128) bf16, lane-dense
            "teacher_b": jnp.zeros((1, c_pad), jnp.float32)}  # (1, 128) f32


def discrimination_loss3(params, inputs, outputs, labels, *,
                         num_classes=NUM_CLASSES, distillation_type="soft",
                         alpha=ALPHA, tau=TAU):
    """inputs: teacher input [B, ...]; outputs: student logits [B, C]; labels: [B]."""
    assert distillation_type in ("none", "soft", "hard")
    batch, c = outputs.shape
    assert c == num_classes
    x_flat = inputs.reshape(batch, -1)                        # stays f32; cast in-kernel
    d = x_flat.shape[1]
    labels2d = labels.reshape(batch, 1).astype(jnp.int32)
    w, b = params["teacher_w"], params["teacher_b"]
    c_pad = w.shape[1]

    tb_rows = _pick_block_rows(batch)
    n_blocks = pl.cdiv(batch, tb_rows)
    assert batch == tb_rows * n_blocks, "batch must be divisible by the row block"

    kernel = functools.partial(
        _loss_kernel, num_classes=num_classes, tau=float(tau), alpha=float(alpha),
        distillation_type=distillation_type, batch=batch)

    cost = pl.CostEstimate(
        flops=2 * batch * d * c_pad + 20 * batch * num_classes,
        transcendentals=3 * batch * num_classes + 4,
        bytes_accessed=(x_flat.size * x_flat.dtype.itemsize
                        + outputs.size * outputs.dtype.itemsize
                        + labels2d.size * 4 + w.size * 2 + c_pad * 4 + 4))

    loss = pl.pallas_call(
        kernel,
        grid_spec=pltpu.PrefetchScalarGridSpec(
            num_scalar_prefetch=0,
            grid=(n_blocks,),
            in_specs=[
                pl.BlockSpec((tb_rows, d), lambda i: (i, 0)),            # teacher activations
                pl.BlockSpec((tb_rows, num_classes), lambda i: (i, 0)),  # student logits
                pl.BlockSpec((tb_rows, 1), lambda i: (i, 0)),            # labels
                pl.BlockSpec((d, c_pad), lambda i: (0, 0)),              # teacher W (resident)
                pl.BlockSpec((1, c_pad), lambda i: (0, 0)),              # teacher b (resident)
            ],
            out_specs=pl.BlockSpec((1, 1), lambda i: (0, 0)),            # scalar loss (resident)
            scratch_shapes=[pltpu.VMEM((1, 1), jnp.float32),             # base-CE partial sum
                            pltpu.VMEM((1, 1), jnp.float32)],            # distillation partial sum
        ),
        out_shape=jax.ShapeDtypeStruct((1, 1), jnp.float32),
        compiler_params=pltpu.CompilerParams(
            dimension_semantics=("arbitrary",),        # grid axis carries the accumulator
            vmem_limit_bytes=32 * 1024 * 1024),        # explicit, safe on v5e/v6e/v7x
        cost_estimate=cost,
    )(x_flat, outputs, labels2d, w, b)
    return loss[0, 0]


if __name__ == "__main__":
    key = jax.random.PRNGKey(0)
    k_in, k_out, k_lab, k_par = jax.random.split(key, 4)

    # small shapes: batch=2, teacher input = [2, 4, 16, 16], num_classes=10
    inputs = jax.random.normal(k_in, (2, 4, 16, 16), jnp.float32)        # fed to teacher
    outputs = jax.random.normal(k_out, (2, NUM_CLASSES), jnp.float32)    # student logits
    labels = jax.random.randint(k_lab, (2,), 0, NUM_CLASSES, dtype=jnp.int32)
    params = init_params(k_par, in_features=4 * 16 * 16)

    loss_fn = jax.jit(functools.partial(discrimination_loss3,
                                        distillation_type="soft",
                                        alpha=ALPHA, tau=TAU))
    loss = loss_fn(params, inputs, outputs, labels)
    jax.block_until_ready(loss)
    assert loss.shape == (), loss.shape
    assert bool(jnp.isfinite(loss)), loss
    print("KERNEL_OK")
</pallas_src>

<mosaic_0001>
module attributes {stable_mosaic.version = 11 : i64} {
  func.func @_loss_kernel(%arg0: i32, %arg1: memref<2x1024xf32, #tpu.memory_space<vmem>>, %arg2: memref<2x10xf32, #tpu.memory_space<vmem>>, %arg3: memref<2x1xi32, #tpu.memory_space<vmem>>, %arg4: memref<1024x128xbf16, #tpu.memory_space<vmem>>, %arg5: memref<1x128xf32, #tpu.memory_space<vmem>>, %arg6: memref<1x1xf32, #tpu.memory_space<vmem>>, %arg7: memref<1x1xf32, #tpu.memory_space<vmem>>, %arg8: memref<1x1xf32, #tpu.memory_space<vmem>>) attributes {dimension_semantics = [#tpu.dimension_semantics<arbitrary>], iteration_bounds = array<i64: 1>, scalar_prefetch = 0 : i64, scratch_operands = 2 : i64, tpu.core_type = #tpu.core_type<tc>, window_params = [{transform_indices = @transform_0, window_bounds = array<i64: 2, 1024>}, {transform_indices = @transform_1, window_bounds = array<i64: 2, 10>}, {transform_indices = @transform_2, window_bounds = array<i64: 2, 1>}, {pipeline_mode = #tpu.pipeline_mode<synchronous>, transform_indices = @transform_3, window_bounds = array<i64: 1024, 128>}, {pipeline_mode = #tpu.pipeline_mode<synchronous>, transform_indices = @transform_4, window_bounds = array<i64: 1, 128>}, {pipeline_mode = #tpu.pipeline_mode<synchronous>, transform_indices = @transform_5, window_bounds = array<i64: 1, 1>}]} {
    %c0_i32 = arith.constant 0 : i32
    %0 = arith.cmpi eq, %arg0, %c0_i32 : i32
    %1 = arith.extui %0 : i1 to i32
    %c0_i32_0 = arith.constant 0 : i32
    %2 = arith.cmpi ne, %1, %c0_i32_0 : i32
    scf.if %2 {
      %cst_32 = arith.constant 0.000000e+00 : f32
      %68 = vector.broadcast %cst_32 : f32 to vector<1x1xf32>
      %c0_33 = arith.constant 0 : index
      %c0_34 = arith.constant 0 : index
      %69 = vector.load %arg7[%c0_33, %c0_34] : memref<1x1xf32, #tpu.memory_space<vmem>>, vector<1x1xf32>
      tpu.vector_store %arg7[%c0_33, %c0_34], %68 {strides = array<i32>} : memref<1x1xf32, #tpu.memory_space<vmem>>, vector<1x1xf32>,
      %cst_35 = arith.constant 0.000000e+00 : f32
      %70 = vector.broadcast %cst_35 : f32 to vector<1x1xf32>
      %c0_36 = arith.constant 0 : index
      %c0_37 = arith.constant 0 : index
      %71 = vector.load %arg8[%c0_36, %c0_37] : memref<1x1xf32, #tpu.memory_space<vmem>>, vector<1x1xf32>
      tpu.vector_store %arg8[%c0_36, %c0_37], %70 {strides = array<i32>} : memref<1x1xf32, #tpu.memory_space<vmem>>, vector<1x1xf32>,
    } else {
    }
    %c0 = arith.constant 0 : index
    %c0_1 = arith.constant 0 : index
    %3 = vector.load %arg2[%c0, %c0_1] : memref<2x10xf32, #tpu.memory_space<vmem>>, vector<2x10xf32>
    %4 = tpu.iota {dimensions = array<i32: 1>} : vector<2x10xi32>
    %c0_2 = arith.constant 0 : index
    %c0_3 = arith.constant 0 : index
    %5 = vector.load %arg3[%c0_2, %c0_3] : memref<2x1xi32, #tpu.memory_space<vmem>>, vector<2x1xi32>
    %6 = vector.broadcast %5 : vector<2x1xi32> to vector<2x10xi32>
    %7 = arith.cmpi eq, %4, %6 : vector<2x10xi32>
    %8 = arith.extui %7 : vector<2x10xi1> to vector<2x10xi32>
    %9 = arith.sitofp %8 : vector<2x10xi32> to vector<2x10xf32>
    %c0_4 = arith.constant 0 : index
    %c0_5 = arith.constant 0 : index
    %10 = vector.load %arg7[%c0_4, %c0_5] : memref<1x1xf32, #tpu.memory_space<vmem>>, vector<1x1xf32>
    %cst = arith.constant dense<0xFF800000> : vector<2xf32>
    %11 = vector.multi_reduction <maximumf>, %3, %cst [1] : vector<2x10xf32> to vector<2xf32>
    %12 = vector.shape_cast %11 : vector<2xf32> to vector<2x1xf32>
    %13 = vector.broadcast %12 : vector<2x1xf32> to vector<2x10xf32>
    %14 = arith.subf %3, %13 : vector<2x10xf32>
    %15 = math.exp %14 : vector<2x10xf32>
    %cst_6 = arith.constant dense<0.000000e+00> : vector<2xf32>
    %16 = vector.multi_reduction <add>, %15, %cst_6 [1] : vector<2x10xf32> to vector<2xf32>
    %17 = vector.shape_cast %16 : vector<2xf32> to vector<2x1xf32>
    %18 = math.log %17 : vector<2x1xf32>
    %19 = vector.broadcast %18 : vector<2x1xf32> to vector<2x10xf32>
    %20 = arith.subf %14, %19 : vector<2x10xf32>
    %cst_7 = arith.constant 0.000000e+00 : f32
    %21 = vector.broadcast %cst_7 : f32 to vector<2x10xf32>
    %22 = arith.subf %21, %20 : vector<2x10xf32>
    %23 = arith.mulf %9, %22 : vector<2x10xf32>
    %cst_8 = arith.constant dense<0.000000e+00> : vector<2xf32>
    %24 = vector.multi_reduction <add>, %23, %cst_8 [1] : vector<2x10xf32> to vector<2xf32>
    %25 = vector.shape_cast %24 : vector<2xf32> to vector<2x1xf32>
    %cst_9 = arith.constant dense<0.000000e+00> : vector<1xf32>
    %26 = vector.multi_reduction <add>, %25, %cst_9 [0] : vector<2x1xf32> to vector<1xf32>
    %27 = vector.shape_cast %26 : vector<1xf32> to vector<1x1xf32>
    %28 = arith.addf %10, %27 : vector<1x1xf32>
    %c0_10 = arith.constant 0 : index
    %c0_11 = arith.constant 0 : index
    %29 = vector.load %arg7[%c0_10, %c0_11] : memref<1x1xf32, #tpu.memory_space<vmem>>, vector<1x1xf32>
    tpu.vector_store %arg7[%c0_10, %c0_11], %28 {strides = array<i32>} : memref<1x1xf32, #tpu.memory_space<vmem>>, vector<1x1xf32>,
    %c0_12 = arith.constant 0 : index
    %c0_13 = arith.constant 0 : index
    %30 = vector.load %arg1[%c0_12, %c0_13] : memref<2x1024xf32, #tpu.memory_space<vmem>>, vector<2x1024xf32>
    %31 = arith.truncf %30 : vector<2x1024xf32> to vector<2x1024xbf16>
    %c0_14 = arith.constant 0 : index
    %c0_15 = arith.constant 0 : index
    %32 = vector.load %arg4[%c0_14, %c0_15] : memref<1024x128xbf16, #tpu.memory_space<vmem>>, vector<1024x128xbf16>
    %cst_16 = arith.constant dense<0.000000e+00> : vector<2x128xf32>
    %33 = tpu.matmul %31, %32, %cst_16 {dimension_numbers = #tpu.dot_dimension_numbers<[1], [0], [0], [1], [0, 0, 1, 1], [], []>} : vector<2x1024xbf16>, vector<1024x128xbf16>, vector<2x128xf32> -> vector<2x128xf32>
    %c0_17 = arith.constant 0 : index
    %c0_18 = arith.constant 0 : index
    %34 = vector.load %arg5[%c0_17, %c0_18] : memref<1x128xf32, #tpu.memory_space<vmem>>, vector<1x128xf32>
    %35 = vector.broadcast %34 : vector<1x128xf32> to vector<2x128xf32>
    %36 = arith.addf %33, %35 : vector<2x128xf32>
    %37 = vector.extract_strided_slice %36 {offsets = [0, 0], sizes = [2, 10], strides = [1, 1]} : vector<2x128xf32> to vector<2x10xf32>
    %cst_19 = arith.constant 5.000000e-01 : f32
    %38 = vector.broadcast %cst_19 : f32 to vector<2x10xf32>
    %39 = arith.mulf %9, %38 : vector<2x10xf32>
    %cst_20 = arith.constant 2.365440e+00 : f32
    %40 = vector.broadcast %cst_20 : f32 to vector<2x10xf32>
    %41 = arith.subf %39, %40 : vector<2x10xf32>
    %cst_21 = arith.constant 5.000000e-01 : f32
    %42 = vector.broadcast %cst_21 : f32 to vector<2x10xf32>
    %43 = arith.mulf %37, %42 : vector<2x10xf32>
    %cst_22 = arith.constant dense<0xFF800000> : vector<2xf32>
    %44 = vector.multi_reduction <maximumf>, %43, %cst_22 [1] : vector<2x10xf32> to vector<2xf32>
    %45 = vector.shape_cast %44 : vector<2xf32> to vector<2x1xf32>
    %46 = vector.broadcast %45 : vector<2x1xf32> to vector<2x10xf32>
    %47 = arith.subf %43, %46 : vector<2x10xf32>
    %48 = math.exp %47 : vector<2x10xf32>
    %cst_23 = arith.constant dense<0.000000e+00> : vector<2xf32>
    %49 = vector.multi_reduction <add>, %48, %cst_23 [1] : vector<2x10xf32> to vector<2xf32>
    %50 = vector.shape_cast %49 : vector<2xf32> to vector<2x1xf32>
    %51 = math.log %50 : vector<2x1xf32>
    %52 = vector.broadcast %51 : vector<2x1xf32> to vector<2x10xf32>
    %53 = arith.subf %47, %52 : vector<2x10xf32>
    %54 = vector.broadcast %50 : vector<2x1xf32> to vector<2x10xf32>
    %55 = arith.divf %48, %54 : vector<2x10xf32>
    %c0_24 = arith.constant 0 : index
    %c0_25 = arith.constant 0 : index
    %56 = vector.load %arg8[%c0_24, %c0_25] : memref<1x1xf32, #tpu.memory_space<vmem>>, vector<1x1xf32>
    %57 = arith.subf %53, %41 : vector<2x10xf32>
    %58 = arith.mulf %55, %57 : vector<2x10xf32>
    %cst_26 = arith.constant dense<0.000000e+00> : vector<2xf32>
    %59 = vector.multi_reduction <add>, %58, %cst_26 [1] : vector<2x10xf32> to vector<2xf32>
    %60 = vector.shape_cast %59 : vector<2xf32> to vector<2x1xf32>
    %cst_27 = arith.constant dense<0.000000e+00> : vector<1xf32>
    %61 = vector.multi_reduction <add>, %60, %cst_27 [0] : vector<2x1xf32> to vector<1xf32>
    %62 = vector.shape_cast %61 : vector<1xf32> to vector<1x1xf32>
    %63 = arith.addf %56, %62 : vector<1x1xf32>
    %c0_28 = arith.constant 0 : index
    %c0_29 = arith.constant 0 : index
    %64 = vector.load %arg8[%c0_28, %c0_29] : memref<1x1xf32, #tpu.memory_space<vmem>>, vector<1x1xf32>
    tpu.vector_store %arg8[%c0_28, %c0_29], %63 {strides = array<i32>} : memref<1x1xf32, #tpu.memory_space<vmem>>, vector<1x1xf32>,
    %c0_i32_30 = arith.constant 0 : i32
    %65 = arith.cmpi eq, %arg0, %c0_i32_30 : i32
    %66 = arith.extui %65 : i1 to i32
    %c0_i32_31 = arith.constant 0 : i32
    %67 = arith.cmpi ne, %66, %c0_i32_31 : i32
    scf.if %67 {
      %c0_32 = arith.constant 0 : index
      %c0_33 = arith.constant 0 : index
      %68 = vector.load %arg7[%c0_32, %c0_33] : memref<1x1xf32, #tpu.memory_space<vmem>>, vector<1x1xf32>
      %cst_34 = arith.constant 5.000000e-01 : f32
      %69 = vector.broadcast %cst_34 : f32 to vector<1x1xf32>
      %70 = arith.mulf %68, %69 : vector<1x1xf32>
      %c0_35 = arith.constant 0 : index
      %c0_36 = arith.constant 0 : index
      %71 = vector.load %arg8[%c0_35, %c0_36] : memref<1x1xf32, #tpu.memory_space<vmem>>, vector<1x1xf32>
      %cst_37 = arith.constant 2.000000e-01 : f32
      %72 = vector.broadcast %cst_37 : f32 to vector<1x1xf32>
      %73 = arith.mulf %71, %72 : vector<1x1xf32>
      %cst_38 = arith.constant 0.000000e+00 : f32
      %74 = vector.broadcast %cst_38 : f32 to vector<1x1xf32>
      %75 = arith.subf %74, %70 : vector<1x1xf32>
      %76 = math.exp %75 : vector<1x1xf32>
      %cst_39 = arith.constant 1.000000e+00 : f32
      %77 = vector.broadcast %cst_39 : f32 to vector<1x1xf32>
      %78 = arith.subf %77, %76 : vector<1x1xf32>
      %cst_40 = arith.constant 3.500000e-01 : f32
      %79 = vector.broadcast %cst_40 : f32 to vector<1x1xf32>
      %80 = arith.cmpf ogt, %78, %79 : vector<1x1xf32>
      %81 = math.exp %78 : vector<1x1xf32>
      %82 = arith.mulf %81, %70 : vector<1x1xf32>
      %83 = arith.mulf %78, %78 : vector<1x1xf32>
      %84 = arith.mulf %83, %70 : vector<1x1xf32>
      %85 = arith.select %80, %82, %84 : vector<1x1xi1>, vector<1x1xf32>
      %cst_41 = arith.constant 5.000000e-01 : f32
      %86 = vector.broadcast %cst_41 : f32 to vector<1x1xf32>
      %87 = arith.mulf %73, %86 : vector<1x1xf32>
      %88 = arith.addf %85, %87 : vector<1x1xf32>
      %c0_42 = arith.constant 0 : index
      %c0_43 = arith.constant 0 : index
      %89 = vector.load %arg6[%c0_42, %c0_43] : memref<1x1xf32, #tpu.memory_space<vmem>>, vector<1x1xf32>
      tpu.vector_store %arg6[%c0_42, %c0_43], %88 {strides = array<i32>} : memref<1x1xf32, #tpu.memory_space<vmem>>, vector<1x1xf32>,
    } else {
    }
    return
  }
  func.func @transform_0(%arg0: i32) -> (i32, i32) {
    %c0_i32 = arith.constant 0 : i32
    %c0_i32_0 = arith.constant 0 : i32
    return %arg0, %c0_i32 : i32, i32
  }
  func.func @transform_1(%arg0: i32) -> (i32, i32) {
    %c0_i32 = arith.constant 0 : i32
    %c0_i32_0 = arith.constant 0 : i32
    return %arg0, %c0_i32 : i32, i32
  }
  func.func @transform_2(%arg0: i32) -> (i32, i32) {
    %c0_i32 = arith.constant 0 : i32
    %c0_i32_0 = arith.constant 0 : i32
    return %arg0, %c0_i32 : i32, i32
  }
  func.func @transform_3(%arg0: i32) -> (i32, i32) {
    %c0_i32 = arith.constant 0 : i32
    %c0_i32_0 = arith.constant 0 : i32
    %c0_i32_1 = arith.constant 0 : i32
    return %c0_i32, %c0_i32_0 : i32, i32
  }
  func.func @transform_4(%arg0: i32) -> (i32, i32) {
    %c0_i32 = arith.constant 0 : i32
    %c0_i32_0 = arith.constant 0 : i32
    %c0_i32_1 = arith.constant 0 : i32
    return %c0_i32, %c0_i32_0 : i32, i32
  }
  func.func @transform_5(%arg0: i32) -> (i32, i32) {
    %c0_i32 = arith.constant 0 : i32
    %c0_i32_0 = arith.constant 0 : i32
    %c0_i32_1 = arith.constant 0 : i32
    return %c0_i32, %c0_i32_0 : i32, i32
  }
}

</mosaic_0001>

<llo_original>
// kernel: discrimination_loss3.1
$region0: #{discrimination_loss3.1}
  #allocation0 [shape = 'u32[]', space=smem, size = 0x4, offset = 0x4, fixed_abs, tag = 'smem constant byte address 0x4 - core index']
  #allocation1 [shape = 'u32[144,128]{1,0:T(1,128)}', space=vmem, size = 0x12000, scoped, tag = 'internal scratch']
  #allocation2 [shape = 'f32[1,1]{1,0:T(1,128)}', space=vmem, size = 0x200, scoped, tag = 'scratch operand']
  #allocation3 [shape = 'f32[1,1]{1,0:T(1,128)}', space=vmem, size = 0x200, scoped, tag = 'scratch operand']
  %s0 = inlined_call_operand.vmem [shape: f32[2,1024], index: 0, kind: input, shape index: {}]
  %s1 = inlined_call_operand.vmem [shape: f32[2,10], index: 1, kind: input, shape index: {}]
  %s2 = inlined_call_operand.vmem [shape: s32[2,1], index: 2, kind: input, shape index: {}]
  %s3 = inlined_call_operand.hbm [shape: bf16[1024,128], index: 3, kind: input, shape index: {}]
  %s4 = inlined_call_operand.vmem [shape: f32[1,128], index: 4, kind: input, shape index: {}]
  %s5 = inlined_call_operand.hbm [shape: f32[1,1], index: 5, kind: output, shape index: {}]
  %s6 = sld [smem:[#allocation0]]
  $region42: #{discrimination_loss3.1} parent=0
    _
  %s8 = ssub.s32 1, %s6
  %s9 = scalar_select 0, %s8, %s6
  $region1: #{discrimination_loss3.1} parent=0
    #allocation4 [shape = 'u8[262144]{0}', space=vmem, size = 0x40000, scoped, tag = 'input window, operand 3, single buffered']
    #allocation5 [shape = 's32[1]{0}', space=sflag, size = 0x4, scoped, tag = 'scoped memory for discrimination_loss3.1']
    #allocation6 [shape = 's32[1]{0}', space=sflag, size = 0x4, scoped, tag = 'scoped memory for discrimination_loss3.1']
    #allocation7 [shape = 'u8[512]{0}', space=vmem, size = 0x400, scoped, tag = 'output window, operand 0, single buffered']
    %10 = vsyncpa [#allocation5], 0
    %11 = vsyncpa [#allocation6], 0
    // Predicated region
    $region2: #{discrimination_loss3.1} parent=1 // pred_check
      _
    $region3: #{discrimination_loss3.1} parent=1 // pred_check_branch
      %13 = sbr.rel (0) target = $region5
    $region4: #{discrimination_loss3.1} parent=1 // pred_region
      _
    $region5: #{discrimination_loss3.1} parent=1 // pred_fallthru
      _
    // Predicated region
    $region6: #{discrimination_loss3.1} parent=1 // pred_check
      _
    $region7: #{discrimination_loss3.1} parent=1 // pred_check_branch
      %15 = sbr.rel (0) target = $region9
    $region8: #{discrimination_loss3.1} parent=1 // pred_region
      _
    $region9: #{discrimination_loss3.1} parent=1 // pred_fallthru
      _
    // Predicated region
    $region10: #{discrimination_loss3.1} parent=1 // pred_check
      _
    $region11: #{discrimination_loss3.1} parent=1 // pred_check_branch
      %17 = sbr.rel (0) target = $region13
    $region12: #{discrimination_loss3.1} parent=1 // pred_region
      _
    $region13: #{discrimination_loss3.1} parent=1 // pred_fallthru
      _
    // Predicated region
    $region14: #{discrimination_loss3.1} parent=1 // pred_check
      _
    $region15: #{discrimination_loss3.1} parent=1 // pred_check_branch
      %19 = sbr.rel (0) target = $region17
    $region16: #{discrimination_loss3.1} parent=1 // pred_region
      %s21 = ssub.s32 8192, 8192
      %22 = vsyncadd [#allocation5], %s21
      %s23 = sshll.u32 [#allocation4], 4
      %s24 = int_to_ptr.vmem [resolvable:$true] %s23
      %29 = dma.hbm_to_vmem [thread:$0]  %s3, 8192, %s24, [#allocation5], 64, 64, 4
    $region17: #{discrimination_loss3.1} parent=1 // pred_fallthru
      _
    // Predicated region
    $region18: #{discrimination_loss3.1} parent=1 // pred_check
      _
    $region19: #{discrimination_loss3.1} parent=1 // pred_check_branch
      %31 = sbr.rel (0) target = $region21
    $region20: #{discrimination_loss3.1} parent=1 // pred_region
      _
    $region21: #{discrimination_loss3.1} parent=1 // pred_fallthru
      _
    // Predicated region
    $region22: #{discrimination_loss3.1} parent=1 // pred_check
      _
    $region23: #{discrimination_loss3.1} parent=1 // pred_check_branch
      %33 = sbr.rel (0) target = $region25
    $region24: #{discrimination_loss3.1} parent=1 // pred_region
      %34 = dma.done [#allocation5], 8192
    $region25: #{discrimination_loss3.1} parent=1 // pred_fallthru
      _
    %p36 = scmp.eq.s32.totalorder 0, 0
    // Predicated region
    $region26: #{discrimination_loss3.1} parent=1 // pred_check
      %p37 = pneg %p36
    $region27: #{discrimination_loss3.1} parent=1 // pred_check_branch
      %39 = sbr.rel (%p37) target = $region29
    $region28: #{discrimination_loss3.1} parent=1 // pred_region
      %vm40 = vcmask 0
      %41 = vst.msk [vmem:[#allocation2] sm:$0x1] %vm40, 0.0
      %42 = vst.msk [vmem:[#allocation3] sm:$0x1] %vm40, 0.0
    $region29: #{discrimination_loss3.1} parent=1 // pred_fallthru
      _
    %v43 = vld [vmem:[%s1] sm:$0x3]
    %v44 = vlaneseq
    %v45 = vand.u32 %v44, 127
    %v46 = vld [vmem:[%s2] sm:$0x3]
    %47 = vset.pattern.permute.xlu0 0
    %48 = vperm.xlu0 %47, %v46
    %v49 = vpop.permute.xlu0 %48
    %vm50 = vcmp.eq.s32.totalorder %v45, %v49
    %v51 = vsel %vm50, 1, 0
    %v52 = vcvt.s32.f32 %v51
    %v53 = vld [vmem:[#allocation2] sm:$0x1]
    %vm54 = vcmask 74752
    %v55 = vsel %vm54, %v43, -inf
    %56 = vmax.xlane.f32.xlu0 %v55
    %v57 = vpop.xlane.xlu0 %56
    %v58 = vsub.f32 %v43, %v57
    %v59 = vmul.f32 %v58, 1.442695
    %v60 = vpow.pop %v59
    %v61 = vsel %vm54, %v60, 0.0
    %62 = vadd.xlane.f32.xlu0 %v61
    %v63 = vpop.xlane.xlu0 %62
    %v64 = vlog2.pop %v63
    %v65 = vmul.f32 %v64, 0.6931472
    %v66 = vsub.f32 %v58, %v65
    %v67 = vsub.f32 0.0, %v66
    %v68 = vmul.f32 %v52, %v67
    %v69 = vsel %vm54, %v68, 0.0
    %70 = vadd.xlane.f32.xlu0 %v69
    %v71 = vpop.xlane.xlu0 %70
    %vm72 = vcmask 1041408
    %v73 = vsel %vm72, %v71, 0.0
    %v74 = vrot.slane %v73, 4
    %v75 = vadd.f32 %v73, %v74
    %v76 = vrot.slane %v75, 2
    %v77 = vadd.f32 %v75, %v76
    %v78 = vrot.slane %v77, 1
    %v79 = vadd.f32 %v77, %v78
    %v80 = vadd.f32 %v53, %v79
    %vm81 = vcmask 0
    %82 = vst.msk [vmem:[#allocation2] sm:$0x1] %vm81, %v80
    %v83 = vld [vmem:[%s0] sm:$0xff]
    %v84 = vld [vmem:[%s0 + $0x8] sm:$0xff]
    %v87 = vcombine.high %v83, %v83
    %v89 = vunpack.c.l.s4 1983009808
    %v90 = vunpack.c.0.s8 %v89
    %v91 = vlaneseq
    %v92 = vshrl.u32 %v91, 7
    %v93 = vsub.s32 %v90, %v92
    %v94 = vrot.slane %v83, %v93
    %v96 = vunpack.c.l.s4 1983009808
    %v97 = vunpack.c.0.s8 %v96
    %v98 = vlaneseq
    %v99 = vshrl.u32 %v98, 7
    %v100 = vsub.s32 %v97, %v99
    %v101 = vrot.slane %v87, %v100
    %v102 = vcombine.high %v94, %v94
    %v103 = vcombine.high %v101, %v101
    %v104 = vcombine.high %v84, %v84
    %v106 = vunpack.c.l.s4 1983009808
    %v107 = vunpack.c.0.s8 %v106
    %v108 = vlaneseq
    %v109 = vshrl.u32 %v108, 7
    %v110 = vsub.s32 %v107, %v109
    %v111 = vrot.slane %v84, %v110
    %v113 = vunpack.c.l.s4 1983009808
    %v114 = vunpack.c.0.s8 %v113
    %v115 = vlaneseq
    %v116 = vshrl.u32 %v115, 7
    %v117 = vsub.s32 %v114, %v116
    %v118 = vrot.slane %v104, %v117
    %v119 = vcombine.high %v111, %v111
    %v120 = vcombine.high %v118, %v118
    %v129 = vpack.c.bf16 %v94, %v94
    %v130 = vpack.c.bf16 %v102, %v102
    %v131 = vpack.c.bf16 %v101, %v101
    %v132 = vpack.c.bf16 %v103, %v103
    %v133 = vpack.c.bf16 %v111, %v111
    %v134 = vpack.c.bf16 %v119, %v119
    %v135 = vpack.c.bf16 %v118, %v118
    %v136 = vpack.c.bf16 %v120, %v120
    %v137 = vld [vmem:[#allocation4] sm:$0xf]
    %v138 = vld [vmem:[#allocation4 + $0x4] sm:$0xf]
    %v139 = vld [vmem:[#allocation4 + $0x8] sm:$0xf]
    %v140 = vld [vmem:[#allocation4 + $0xc] sm:$0xf]
    %v141 = vld [vmem:[#allocation4 + $0x10] sm:$0xf]
    %v142 = vld [vmem:[#allocation4 + $0x14] sm:$0xf]
    %v143 = vld [vmem:[#allocation4 + $0x18] sm:$0xf]
    %v144 = vld [vmem:[#allocation4 + $0x1c] sm:$0xf]
    %v145 = vld [vmem:[#allocation4 + $0x20] sm:$0xf]
    %v146 = vld [vmem:[#allocation4 + $0x24] sm:$0xf]
    %v147 = vld [vmem:[#allocation4 + $0x28] sm:$0xf]
    %v148 = vld [vmem:[#allocation4 + $0x2c] sm:$0xf]
    %v149 = vld [vmem:[#allocation4 + $0x30] sm:$0xf]
    %v150 = vld [vmem:[#allocation4 + $0x34] sm:$0xf]
    %v151 = vld [vmem:[#allocation4 + $0x38] sm:$0xf]
    %v152 = vld [vmem:[#allocation4 + $0x3c] sm:$0xf]
    %v153 = vld [vmem:[#allocation4 + $0x40] sm:$0xf]
    %v154 = vld [vmem:[#allocation4 + $0x44] sm:$0xf]
    %v155 = vld [vmem:[#allocation4 + $0x48] sm:$0xf]
    %v156 = vld [vmem:[#allocation4 + $0x4c] sm:$0xf]
    %v157 = vld [vmem:[#allocation4 + $0x50] sm:$0xf]
    %v158 = vld [vmem:[#allocation4 + $0x54] sm:$0xf]
    %v159 = vld [vmem:[#allocation4 + $0x58] sm:$0xf]
    %v160 = vld [vmem:[#allocation4 + $0x5c] sm:$0xf]
    %v161 = vld [vmem:[#allocation4 + $0x60] sm:$0xf]
    %v162 = vld [vmem:[#allocation4 + $0x64] sm:$0xf]
    %v163 = vld [vmem:[#allocation4 + $0x68] sm:$0xf]
    %v164 = vld [vmem:[#allocation4 + $0x6c] sm:$0xf]
    %v165 = vld [vmem:[#allocation4 + $0x70] sm:$0xf]
    %v166 = vld [vmem:[#allocation4 + $0x74] sm:$0xf]
    %v167 = vld [vmem:[#allocation4 + $0x78] sm:$0xf]
    %v168 = vld [vmem:[#allocation4 + $0x7c] sm:$0xf]
    %v169 = vld [vmem:[#allocation4 + $0x80] sm:$0xf]
    %v170 = vld [vmem:[#allocation4 + $0x84] sm:$0xf]
    %v171 = vld [vmem:[#allocation4 + $0x88] sm:$0xf]
    %v172 = vld [vmem:[#allocation4 + $0x8c] sm:$0xf]
    %v173 = vld [vmem:[#allocation4 + $0x90] sm:$0xf]
    %v174 = vld [vmem:[#allocation4 + $0x94] sm:$0xf]
    %v175 = vld [vmem:[#allocation4 + $0x98] sm:$0xf]
    %v176 = vld [vmem:[#allocation4 + $0x9c] sm:$0xf]
    %v177 = vld [vmem:[#allocation4 + $0xa0] sm:$0xf]
    %v178 = vld [vmem:[#allocation4 + $0xa4] sm:$0xf]
    %v179 = vld [vmem:[#allocation4 + $0xa8] sm:$0xf]
    %v180 = vld [vmem:[#allocation4 + $0xac] sm:$0xf]
    %v181 = vld [vmem:[#allocation4 + $0xb0] sm:$0xf]
    %v182 = vld [vmem:[#allocation4 + $0xb4] sm:$0xf]
    %v183 = vld [vmem:[#allocation4 + $0xb8] sm:$0xf]
    %v184 = vld [vmem:[#allocation4 + $0xbc] sm:$0xf]
    %v185 = vld [vmem:[#allocation4 + $0xc0] sm:$0xf]
    %v186 = vld [vmem:[#allocation4 + $0xc4] sm:$0xf]
    %v187 = vld [vmem:[#allocation4 + $0xc8] sm:$0xf]
    %v188 = vld [vmem:[#allocation4 + $0xcc] sm:$0xf]
    %v189 = vld [vmem:[#allocation4 + $0xd0] sm:$0xf]
    %v190 = vld [vmem:[#allocation4 + $0xd4] sm:$0xf]
    %v191 = vld [vmem:[#allocation4 + $0xd8] sm:$0xf]
    %v192 = vld [vmem:[#allocation4 + $0xdc] sm:$0xf]
    %v193 = vld [vmem:[#allocation4 + $0xe0] sm:$0xf]
    %v194 = vld [vmem:[#allocation4 + $0xe4] sm:$0xf]
    %v195 = vld [vmem:[#allocation4 + $0xe8] sm:$0xf]
    %v196 = vld [vmem:[#allocation4 + $0xec] sm:$0xf]
    %v197 = vld [vmem:[#allocation4 + $0xf0] sm:$0xf]
    %v198 = vld [vmem:[#allocation4 + $0xf4] sm:$0xf]
    %v199 = vld [vmem:[#allocation4 + $0xf8] sm:$0xf]
    %v200 = vld [vmem:[#allocation4 + $0xfc] sm:$0xf]
    %v201 = vld [vmem:[#allocation4 + $0x100] sm:$0xf]
    %v202 = vld [vmem:[#allocation4 + $0x104] sm:$0xf]
    %v203 = vld [vmem:[#allocation4 + $0x108] sm:$0xf]
    %v204 = vld [vmem:[#allocation4 + $0x10c] sm:$0xf]
    %v205 = vld [vmem:[#allocation4 + $0x110] sm:$0xf]
    %v206 = vld [vmem:[#allocation4 + $0x114] sm:$0xf]
    %v207 = vld [vmem:[#allocation4 + $0x118] sm:$0xf]
    %v208 = vld [vmem:[#allocation4 + $0x11c] sm:$0xf]
    %v209 = vld [vmem:[#allocation4 + $0x120] sm:$0xf]
    %v210 = vld [vmem:[#allocation4 + $0x124] sm:$0xf]
    %v211 = vld [vmem:[#allocation4 + $0x128] sm:$0xf]
    %v212 = vld [vmem:[#allocation4 + $0x12c] sm:$0xf]
    %v213 = vld [vmem:[#allocation4 + $0x130] sm:$0xf]
    %v214 = vld [vmem:[#allocation4 + $0x134] sm:$0xf]
    %v215 = vld [vmem:[#allocation4 + $0x138] sm:$0xf]
    %v216 = vld [vmem:[#allocation4 + $0x13c] sm:$0xf]
    %v217 = vld [vmem:[#allocation4 + $0x140] sm:$0xf]
    %v218 = vld [vmem:[#allocation4 + $0x144] sm:$0xf]
    %v219 = vld [vmem:[#allocation4 + $0x148] sm:$0xf]
    %v220 = vld [vmem:[#allocation4 + $0x14c] sm:$0xf]
    %v221 = vld [vmem:[#allocation4 + $0x150] sm:$0xf]
    %v222 = vld [vmem:[#allocation4 + $0x154] sm:$0xf]
    %v223 = vld [vmem:[#allocation4 + $0x158] sm:$0xf]
    %v224 = vld [vmem:[#allocation4 + $0x15c] sm:$0xf]
    %v225 = vld [vmem:[#allocation4 + $0x160] sm:$0xf]
    %v226 = vld [vmem:[#allocation4 + $0x164] sm:$0xf]
    %v227 = vld [vmem:[#allocation4 + $0x168] sm:$0xf]
    %v228 = vld [vmem:[#allocation4 + $0x16c] sm:$0xf]
    %v229 = vld [vmem:[#allocation4 + $0x170] sm:$0xf]
    %v230 = vld [vmem:[#allocation4 + $0x174] sm:$0xf]
    %v231 = vld [vmem:[#allocation4 + $0x178] sm:$0xf]
    %v232 = vld [vmem:[#allocation4 + $0x17c] sm:$0xf]
    %v233 = vld [vmem:[#allocation4 + $0x180] sm:$0xf]
    %v234 = vld [vmem:[#allocation4 + $0x184] sm:$0xf]
    %v235 = vld [vmem:[#allocation4 + $0x188] sm:$0xf]
    %v236 = vld [vmem:[#allocation4 + $0x18c] sm:$0xf]
    %v237 = vld [vmem:[#allocation4 + $0x190] sm:$0xf]
    %v238 = vld [vmem:[#allocation4 + $0x194] sm:$0xf]
    %v239 = vld [vmem:[#allocation4 + $0x198] sm:$0xf]
    %v240 = vld [vmem:[#allocation4 + $0x19c] sm:$0xf]
    %v241 = vld [vmem:[#allocation4 + $0x1a0] sm:$0xf]
    %v242 = vld [vmem:[#allocation4 + $0x1a4] sm:$0xf]
    %v243 = vld [vmem:[#allocation4 + $0x1a8] sm:$0xf]
    %v244 = vld [vmem:[#allocation4 + $0x1ac] sm:$0xf]
    %v245 = vld [vmem:[#allocation4 + $0x1b0] sm:$0xf]
    %v246 = vld [vmem:[#allocation4 + $0x1b4] sm:$0xf]
    %v247 = vld [vmem:[#allocation4 + $0x1b8] sm:$0xf]
    %v248 = vld [vmem:[#allocation4 + $0x1bc] sm:$0xf]
    %v249 = vld [vmem:[#allocation4 + $0x1c0] sm:$0xf]
    %v250 = vld [vmem:[#allocation4 + $0x1c4] sm:$0xf]
    %v251 = vld [vmem:[#allocation4 + $0x1c8] sm:$0xf]
    %v252 = vld [vmem:[#allocation4 + $0x1cc] sm:$0xf]
    %v253 = vld [vmem:[#allocation4 + $0x1d0] sm:$0xf]
    %v254 = vld [vmem:[#allocation4 + $0x1d4] sm:$0xf]
    %v255 = vld [vmem:[#allocation4 + $0x1d8] sm:$0xf]
    %v256 = vld [vmem:[#allocation4 + $0x1dc] sm:$0xf]
    %v257 = vld [vmem:[#allocation4 + $0x1e0] sm:$0xf]
    %v258 = vld [vmem:[#allocation4 + $0x1e4] sm:$0xf]
    %v259 = vld [vmem:[#allocation4 + $0x1e8] sm:$0xf]
    %v260 = vld [vmem:[#allocation4 + $0x1ec] sm:$0xf]
    %v261 = vld [vmem:[#allocation4 + $0x1f0] sm:$0xf]
    %v262 = vld [vmem:[#allocation4 + $0x1f4] sm:$0xf]
    %v263 = vld [vmem:[#allocation4 + $0x1f8] sm:$0xf]
    %v264 = vld [vmem:[#allocation4 + $0x1fc] sm:$0xf]
    %v265 = vld [vmem:[%s4] sm:$0x1]
    %v267 = vlaneseq
    %v268 = vshrl.u32 %v267, 7
    %v269 = vsub.s32 0, %v268
    %v270 = vrot.slane %v265, %v269
    %v400 = vunpack.c.l.b16 %v137
    %v401 = vunpack.c.l.b16 %v138
    %v402 = vunpack.c.l.b16 %v139
    %v403 = vunpack.c.l.b16 %v140
    %v404 = vunpack.c.l.b16 %v141
    %v405 = vunpack.c.l.b16 %v142
    %v406 = vunpack.c.l.b16 %v143
    %v407 = vunpack.c.l.b16 %v144
    %v408 = vunpack.c.l.b16 %v145
    %v409 = vunpack.c.l.b16 %v146
    %v410 = vunpack.c.l.b16 %v147
    %v411 = vunpack.c.l.b16 %v148
    %v412 = vunpack.c.l.b16 %v149
    %v413 = vunpack.c.l.b16 %v150
    %v414 = vunpack.c.l.b16 %v151
    %v415 = vunpack.c.l.b16 %v152
    %v416 = vunpack.c.l.b16 %v153
    %v417 = vunpack.c.l.b16 %v154
    %v418 = vunpack.c.l.b16 %v155
    %v419 = vunpack.c.l.b16 %v156
    %v420 = vunpack.c.l.b16 %v157
    %v421 = vunpack.c.l.b16 %v158
    %v422 = vunpack.c.l.b16 %v159
    %v423 = vunpack.c.l.b16 %v160
    %v424 = vunpack.c.l.b16 %v161
    %v425 = vunpack.c.l.b16 %v162
    %v426 = vunpack.c.l.b16 %v163
    %v427 = vunpack.c.l.b16 %v164
    %v428 = vunpack.c.l.b16 %v165
    %v429 = vunpack.c.l.b16 %v166
    %v430 = vunpack.c.l.b16 %v167
    %v431 = vunpack.c.l.b16 %v168
    %v432 = vunpack.c.l.b16 %v169
    %v433 = vunpack.c.l.b16 %v170
    %v434 = vunpack.c.l.b16 %v171
    %v435 = vunpack.c.l.b16 %v172
    %v436 = vunpack.c.l.b16 %v173
    %v437 = vunpack.c.l.b16 %v174
    %v438 = vunpack.c.l.b16 %v175
    %v439 = vunpack.c.l.b16 %v176
    %v440 = vunpack.c.l.b16 %v177
    %v441 = vunpack.c.l.b16 %v178
    %v442 = vunpack.c.l.b16 %v179
    %v443 = vunpack.c.l.b16 %v180
    %v444 = vunpack.c.l.b16 %v181
    %v445 = vunpack.c.l.b16 %v182
    %v446 = vunpack.c.l.b16 %v183
    %v447 = vunpack.c.l.b16 %v184
    %v448 = vunpack.c.l.b16 %v185
    %v449 = vunpack.c.l.b16 %v186
    %v450 = vunpack.c.l.b16 %v187
    %v451 = vunpack.c.l.b16 %v188
    %v452 = vunpack.c.l.b16 %v189
    %v453 = vunpack.c.l.b16 %v190
    %v454 = vunpack.c.l.b16 %v191
    %v455 = vunpack.c.l.b16 %v192
    %v456 = vunpack.c.l.b16 %v193
    %v457 = vunpack.c.l.b16 %v194
    %v458 = vunpack.c.l.b16 %v195
    %v459 = vunpack.c.l.b16 %v196
    %v460 = vunpack.c.l.b16 %v197
    %v461 = vunpack.c.l.b16 %v198
    %v462 = vunpack.c.l.b16 %v199
    %v463 = vunpack.c.l.b16 %v200
    %v464 = vunpack.c.l.b16 %v201
    %v465 = vunpack.c.l.b16 %v202
    %v466 = vunpack.c.l.b16 %v203
    %v467 = vunpack.c.l.b16 %v204
    %v468 = vunpack.c.l.b16 %v205
    %v469 = vunpack.c.l.b16 %v206
    %v470 = vunpack.c.l.b16 %v207
    %v471 = vunpack.c.l.b16 %v208
    %v472 = vunpack.c.l.b16 %v209
    %v473 = vunpack.c.l.b16 %v210
    %v474 = vunpack.c.l.b16 %v211
    %v475 = vunpack.c.l.b16 %v212
    %v476 = vunpack.c.l.b16 %v213
    %v477 = vunpack.c.l.b16 %v214
    %v478 = vunpack.c.l.b16 %v215
    %v479 = vunpack.c.l.b16 %v216
    %v480 = vunpack.c.l.b16 %v217
    %v481 = vunpack.c.l.b16 %v218
    %v482 = vunpack.c.l.b16 %v219
    %v483 = vunpack.c.l.b16 %v220
    %v484 = vunpack.c.l.b16 %v221
    %v485 = vunpack.c.l.b16 %v222
    %v486 = vunpack.c.l.b16 %v223
    %v487 = vunpack.c.l.b16 %v224
    %v488 = vunpack.c.l.b16 %v225
    %v489 = vunpack.c.l.b16 %v226
    %v490 = vunpack.c.l.b16 %v227
    %v491 = vunpack.c.l.b16 %v228
    %v492 = vunpack.c.l.b16 %v229
    %v493 = vunpack.c.l.b16 %v230
    %v494 = vunpack.c.l.b16 %v231
    %v495 = vunpack.c.l.b16 %v232
    %v496 = vunpack.c.l.b16 %v233
    %v497 = vunpack.c.l.b16 %v234
    %v498 = vunpack.c.l.b16 %v235
    %v499 = vunpack.c.l.b16 %v236
    %v500 = vunpack.c.l.b16 %v237
    %v501 = vunpack.c.l.b16 %v238
    %v502 = vunpack.c.l.b16 %v239
    %v503 = vunpack.c.l.b16 %v240
    %v504 = vunpack.c.l.b16 %v241
    %v505 = vunpack.c.l.b16 %v242
    %v506 = vunpack.c.l.b16 %v243
    %v507 = vunpack.c.l.b16 %v244
    %v508 = vunpack.c.l.b16 %v245
    %v509 = vunpack.c.l.b16 %v246
    %v510 = vunpack.c.l.b16 %v247
    %v511 = vunpack.c.l.b16 %v248
    %v512 = vunpack.c.l.b16 %v249
    %v513 = vunpack.c.l.b16 %v250
    %v514 = vunpack.c.l.b16 %v251
    %v515 = vunpack.c.l.b16 %v252
    %v516 = vunpack.c.l.b16 %v253
    %v517 = vunpack.c.l.b16 %v254
    %v518 = vunpack.c.l.b16 %v255
    %v519 = vunpack.c.l.b16 %v256
    %v520 = vunpack.c.l.b16 %v257
    %v521 = vunpack.c.l.b16 %v258
    %v522 = vunpack.c.l.b16 %v259
    %v523 = vunpack.c.l.b16 %v260
    %v524 = vunpack.c.l.b16 %v261
    %v525 = vunpack.c.l.b16 %v262
    %v526 = vunpack.c.l.b16 %v263
    %v527 = vunpack.c.l.b16 %v264
    %v528 = vpack.c.b16 %v401, %v400
    %v529 = vpack.c.b16 %v403, %v402
    %v530 = vpack.c.b16 %v405, %v404
    %v531 = vpack.c.b16 %v407, %v406
    %v532 = vpack.c.b16 %v409, %v408
    %v533 = vpack.c.b16 %v411, %v410
    %v534 = vpack.c.b16 %v413, %v412
    %v535 = vpack.c.b16 %v415, %v414
    %v536 = vpack.c.b16 %v417, %v416
    %v537 = vpack.c.b16 %v419, %v418
    %v538 = vpack.c.b16 %v421, %v420
    %v539 = vpack.c.b16 %v423, %v422
    %v540 = vpack.c.b16 %v425, %v424
    %v541 = vpack.c.b16 %v427, %v426
    %v542 = vpack.c.b16 %v429, %v428
    %v543 = vpack.c.b16 %v431, %v430
    %v544 = vpack.c.b16 %v433, %v432
    %v545 = vpack.c.b16 %v435, %v434
    %v546 = vpack.c.b16 %v437, %v436
    %v547 = vpack.c.b16 %v439, %v438
    %v548 = vpack.c.b16 %v441, %v440
    %v549 = vpack.c.b16 %v443, %v442
    %v550 = vpack.c.b16 %v445, %v444
    %v551 = vpack.c.b16 %v447, %v446
    %v552 = vpack.c.b16 %v449, %v448
    %v553 = vpack.c.b16 %v451, %v450
    %v554 = vpack.c.b16 %v453, %v452
    %v555 = vpack.c.b16 %v455, %v454
    %v556 = vpack.c.b16 %v457, %v456
    %v557 = vpack.c.b16 %v459, %v458
    %v558 = vpack.c.b16 %v461, %v460
    %v559 = vpack.c.b16 %v463, %v462
    %v560 = vpack.c.b16 %v465, %v464
    %v561 = vpack.c.b16 %v467, %v466
    %v562 = vpack.c.b16 %v469, %v468
    %v563 = vpack.c.b16 %v471, %v470
    %v564 = vpack.c.b16 %v473, %v472
    %v565 = vpack.c.b16 %v475, %v474
    %v566 = vpack.c.b16 %v477, %v476
    %v567 = vpack.c.b16 %v479, %v478
    %v568 = vpack.c.b16 %v481, %v480
    %v569 = vpack.c.b16 %v483, %v482
    %v570 = vpack.c.b16 %v485, %v484
    %v571 = vpack.c.b16 %v487, %v486
    %v572 = vpack.c.b16 %v489, %v488
    %v573 = vpack.c.b16 %v491, %v490
    %v574 = vpack.c.b16 %v493, %v492
    %v575 = vpack.c.b16 %v495, %v494
    %v576 = vpack.c.b16 %v497, %v496
    %v577 = vpack.c.b16 %v499, %v498
    %v578 = vpack.c.b16 %v501, %v500
    %v579 = vpack.c.b16 %v503, %v502
    %v580 = vpack.c.b16 %v505, %v504
    %v581 = vpack.c.b16 %v507, %v506
    %v582 = vpack.c.b16 %v509, %v508
    %v583 = vpack.c.b16 %v511, %v510
    %v584 = vpack.c.b16 %v513, %v512
    %v585 = vpack.c.b16 %v515, %v514
    %v586 = vpack.c.b16 %v517, %v516
    %v587 = vpack.c.b16 %v519, %v518
    %v588 = vpack.c.b16 %v521, %v520
    %v589 = vpack.c.b16 %v523, %v522
    %v590 = vpack.c.b16 %v525, %v524
    %v591 = vpack.c.b16 %v527, %v526
    %656 = vmatprep.subr.bf16.mxu0 0
    %657 = vmatpush1.bf16.msra.mxu0 %v528
    %658 = vmatprep.subr.bf16.mxu0 0
    %659 = vmatpush1.bf16.msra.mxu0 %v529
    %660 = vmatprep.subr.bf16.mxu0 0
    %661 = vmatpush1.bf16.msra.mxu0 %v530
    %662 = vmatprep.subr.bf16.mxu0 0
    %663 = vmatpush1.bf16.msra.mxu0 %v531
    %664 = vmatprep.subr.bf16.mxu0 0
    %665 = vmatpush1.bf16.msra.mxu0 %v532
    %666 = vmatprep.subr.bf16.mxu0 0
    %667 = vmatpush1.bf16.msra.mxu0 %v533
    %668 = vmatprep.subr.bf16.mxu0 0
    %669 = vmatpush1.bf16.msra.mxu0 %v534
    %670 = vmatprep.subr.bf16.mxu0 0
    %671 = vmatpush1.bf16.msra.mxu0 %v535
    %672 = vmatprep.subr.bf16.mxu0 0
    %673 = vmatpush1.bf16.msra.mxu0 %v536
    %674 = vmatprep.subr.bf16.mxu0 0
    %675 = vmatpush1.bf16.msra.mxu0 %v537
    %676 = vmatprep.subr.bf16.mxu0 0
    %677 = vmatpush1.bf16.msra.mxu0 %v538
    %678 = vmatprep.subr.bf16.mxu0 0
    %679 = vmatpush1.bf16.msra.mxu0 %v539
    %680 = vmatprep.subr.bf16.mxu0 0
    %681 = vmatpush1.bf16.msra.mxu0 %v540
    %682 = vmatprep.subr.bf16.mxu0 0
    %683 = vmatpush1.bf16.msra.mxu0 %v541
    %684 = vmatprep.subr.bf16.mxu0 0
    %685 = vmatpush1.bf16.msra.mxu0 %v542
    %686 = vmatprep.subr.bf16.mxu0 0
    %687 = vmatpush1.bf16.msra.mxu0 %v543
    %688 = vmatprep.mubr.bf16.mxu0 %v130
    %689 = vmatmul.mubr.bf16.gmra.mrb[0].mxu0 %v129
    %v690 = vpop.f32.mrb[0].mxu0
    %v691 = vadd.f32 %v270, %v690
    %v692 = vpop.f32.mrb[0].mxu0
    %v693 = vpop.f32.mrb[0].mxu0
    %v694 = vpop.f32.mrb[0].mxu0
    %695 = vdwg.mxu0
    %696 = vmatprep.subr.bf16.mxu0 0
    %697 = vmatpush1.bf16.msra.mxu0 %v544
    %698 = vmatprep.subr.bf16.mxu0 0
    %699 = vmatpush1.bf16.msra.mxu0 %v545
    %700 = vmatprep.subr.bf16.mxu0 0
    %701 = vmatpush1.bf16.msra.mxu0 %v546
    %702 = vmatprep.subr.bf16.mxu0 0
    %703 = vmatpush1.bf16.msra.mxu0 %v547
    %704 = vmatprep.subr.bf16.mxu0 0
    %705 = vmatpush1.bf16.msra.mxu0 %v548
    %706 = vmatprep.subr.bf16.mxu0 0
    %707 = vmatpush1.bf16.msra.mxu0 %v549
    %708 = vmatprep.subr.bf16.mxu0 0
    %709 = vmatpush1.bf16.msra.mxu0 %v550
    %710 = vmatprep.subr.bf16.mxu0 0
    %711 = vmatpush1.bf16.msra.mxu0 %v551
    %712 = vmatprep.subr.bf16.mxu0 0
    %713 = vmatpush1.bf16.msra.mxu0 %v552
    %714 = vmatprep.subr.bf16.mxu0 0
    %715 = vmatpush1.bf16.msra.mxu0 %v553
    %716 = vmatprep.subr.bf16.mxu0 0
    %717 = vmatpush1.bf16.msra.mxu0 %v554
    %718 = vmatprep.subr.bf16.mxu0 0
    %719 = vmatpush1.bf16.msra.mxu0 %v555
    %720 = vmatprep.subr.bf16.mxu0 0
    %721 = vmatpush1.bf16.msra.mxu0 %v556
    %722 = vmatprep.subr.bf16.mxu0 0
    %723 = vmatpush1.bf16.msra.mxu0 %v557
    %724 = vmatprep.subr.bf16.mxu0 0
    %725 = vmatpush1.bf16.msra.mxu0 %v558
    %726 = vmatprep.subr.bf16.mxu0 0
    %727 = vmatpush1.bf16.msra.mxu0 %v559
    %728 = vmatprep.mubr.bf16.mxu0 %v132
    %729 = vmatmul.mubr.bf16.gmra.mrb[0].mxu0 %v131
    %v730 = vpop.f32.mrb[0].mxu0
    %v731 = vadd.f32 %v691, %v730
    %v732 = vpop.f32.mrb[0].mxu0
    %v733 = vpop.f32.mrb[0].mxu0
    %v734 = vpop.f32.mrb[0].mxu0
    %735 = vdwg.mxu0
    %736 = vmatprep.subr.bf16.mxu0 0
    %737 = vmatpush1.bf16.msra.mxu0 %v560
    %738 = vmatprep.subr.bf16.mxu0 0
    %739 = vmatpush1.bf16.msra.mxu0 %v561
    %740 = vmatprep.subr.bf16.mxu0 0
    %741 = vmatpush1.bf16.msra.mxu0 %v562
    %742 = vmatprep.subr.bf16.mxu0 0
    %743 = vmatpush1.bf16.msra.mxu0 %v563
    %744 = vmatprep.subr.bf16.mxu0 0
    %745 = vmatpush1.bf16.msra.mxu0 %v564
    %746 = vmatprep.subr.bf16.mxu0 0
    %747 = vmatpush1.bf16.msra.mxu0 %v565
    %748 = vmatprep.subr.bf16.mxu0 0
    %749 = vmatpush1.bf16.msra.mxu0 %v566
    %750 = vmatprep.subr.bf16.mxu0 0
    %751 = vmatpush1.bf16.msra.mxu0 %v567
    %752 = vmatprep.subr.bf16.mxu0 0
    %753 = vmatpush1.bf16.msra.mxu0 %v568
    %754 = vmatprep.subr.bf16.mxu0 0
    %755 = vmatpush1.bf16.msra.mxu0 %v569
    %756 = vmatprep.subr.bf16.mxu0 0
    %757 = vmatpush1.bf16.msra.mxu0 %v570
    %758 = vmatprep.subr.bf16.mxu0 0
    %759 = vmatpush1.bf16.msra.mxu0 %v571
    %760 = vmatprep.subr.bf16.mxu0 0
    %761 = vmatpush1.bf16.msra.mxu0 %v572
    %762 = vmatprep.subr.bf16.mxu0 0
    %763 = vmatpush1.bf16.msra.mxu0 %v573
    %764 = vmatprep.subr.bf16.mxu0 0
    %765 = vmatpush1.bf16.msra.mxu0 %v574
    %766 = vmatprep.subr.bf16.mxu0 0
    %767 = vmatpush1.bf16.msra.mxu0 %v575
    %768 = vmatprep.mubr.bf16.mxu0 %v134
    %769 = vmatmul.mubr.bf16.gmra.mrb[0].mxu0 %v133
    %v770 = vpop.f32.mrb[0].mxu0
    %v771 = vadd.f32 %v731, %v770
    %v772 = vpop.f32.mrb[0].mxu0
    %v773 = vpop.f32.mrb[0].mxu0
    %v774 = vpop.f32.mrb[0].mxu0
    %775 = vdwg.mxu0
    %776 = vmatprep.subr.bf16.mxu0 0
    %777 = vmatpush1.bf16.msra.mxu0 %v576
    %778 = vmatprep.subr.bf16.mxu0 0
    %779 = vmatpush1.bf16.msra.mxu0 %v577
    %780 = vmatprep.subr.bf16.mxu0 0
    %781 = vmatpush1.bf16.msra.mxu0 %v578
    %782 = vmatprep.subr.bf16.mxu0 0
    %783 = vmatpush1.bf16.msra.mxu0 %v579
    %784 = vmatprep.subr.bf16.mxu0 0
    %785 = vmatpush1.bf16.msra.mxu0 %v580
    %786 = vmatprep.subr.bf16.mxu0 0
    %787 = vmatpush1.bf16.msra.mxu0 %v581
    %788 = vmatprep.subr.bf16.mxu0 0
    %789 = vmatpush1.bf16.msra.mxu0 %v582
    %790 = vmatprep.subr.bf16.mxu0 0
    %791 = vmatpush1.bf16.msra.mxu0 %v583
    %792 = vmatprep.subr.bf16.mxu0 0
    %793 = vmatpush1.bf16.msra.mxu0 %v584
    %794 = vmatprep.subr.bf16.mxu0 0
    %795 = vmatpush1.bf16.msra.mxu0 %v585
    %796 = vmatprep.subr.bf16.mxu0 0
    %797 = vmatpush1.bf16.msra.mxu0 %v586
    %798 = vmatprep.subr.bf16.mxu0 0
    %799 = vmatpush1.bf16.msra.mxu0 %v587
    %800 = vmatprep.subr.bf16.mxu0 0
    %801 = vmatpush1.bf16.msra.mxu0 %v588
    %802 = vmatprep.subr.bf16.mxu0 0
    %803 = vmatpush1.bf16.msra.mxu0 %v589
    %804 = vmatprep.subr.bf16.mxu0 0
    %805 = vmatpush1.bf16.msra.mxu0 %v590
    %806 = vmatprep.subr.bf16.mxu0 0
    %807 = vmatpush1.bf16.msra.mxu0 %v591
    %808 = vmatprep.mubr.bf16.mxu0 %v136
    %809 = vmatmul.mubr.bf16.gmra.mrb[0].mxu0 %v135
    %v810 = vpop.f32.mrb[0].mxu0
    %v811 = vadd.f32 %v771, %v810
    %v812 = vpop.f32.mrb[0].mxu0
    %v813 = vpop.f32.mrb[0].mxu0
    %v814 = vpop.f32.mrb[0].mxu0
    %815 = vdwg.mxu0
    %v816 = vmul.f32 %v52, 0.5
    %v817 = vsub.f32 %v816, 2.36544
    %v818 = vmul.f32 %v811, 0.5
    %v819 = vsel %vm54, %v818, -inf
    %820 = vmax.xlane.f32.xlu0 %v819
    %v821 = vpop.xlane.xlu0 %820
    %v822 = vsub.f32 %v818, %v821
    %v823 = vmul.f32 %v822, 1.442695
    %v824 = vpow.pop %v823
    %v825 = vsel %vm54, %v824, 0.0
    %826 = vadd.xlane.f32.xlu0 %v825
    %v827 = vpop.xlane.xlu0 %826
    %v828 = vlog2.pop %v827
    %v829 = vmul.f32 %v828, 0.6931472
    %v830 = vsub.f32 %v822, %v829
    %v831 = vrcp.pop %v827
    %v832 = vmul.f32 %v824, %v831
    %v833 = vld [vmem:[#allocation3] sm:$0x1]
    %v834 = vsub.f32 %v830, %v817
    %v835 = vmul.f32 %v832, %v834
    %v836 = vsel %vm54, %v835, 0.0
    %837 = vadd.xlane.f32.xlu0 %v836
    %v838 = vpop.xlane.xlu0 %837
    %v839 = vsel %vm72, %v838, 0.0
    %v840 = vrot.slane %v839, 4
    %v841 = vadd.f32 %v839, %v840
    %v842 = vrot.slane %v841, 2
    %v843 = vadd.f32 %v841, %v842
    %v844 = vrot.slane %v843, 1
    %v845 = vadd.f32 %v843, %v844
    %v846 = vadd.f32 %v833, %v845
    %847 = vst.msk [vmem:[#allocation3] sm:$0x1] %vm81, %v846
    // Predicated region
    $region30: #{discrimination_loss3.1} parent=1 // pred_check
      %p848 = pneg %p36
    $region31: #{discrimination_loss3.1} parent=1 // pred_check_branch
      %850 = sbr.rel (%p848) target = $region33
    $region32: #{discrimination_loss3.1} parent=1 // pred_region
      %v851 = vld [vmem:[#allocation2] sm:$0x1]
      %v852 = vmul.f32 %v851, 0.5
      %v853 = vld [vmem:[#allocation3] sm:$0x1]
      %v854 = vmul.f32 %v853, 0.2
      %v855 = vsub.f32 0.0, %v852
      %v856 = vmul.f32 %v855, 1.442695
      %v857 = vpow.pop %v856
      %v858 = vsub.f32 1.0, %v857
      %vm859 = vcmp.gt.f32.partialorder %v858, 0.35
      %v860 = vmul.f32 %v858, 1.442695
      %v861 = vpow.pop %v860
      %v862 = vmul.f32 %v861, %v852
      %v863 = vmul.f32 %v858, %v858
      %v864 = vmul.f32 %v863, %v852
      %v865 = vsel %vm859, %v862, %v864
      %v866 = vmul.f32 %v854, 0.5
      %v867 = vadd.f32 %v865, %v866
      %868 = vst.msk [vmem:[#allocation7] sm:$0x1] %vm81, %v867
    $region33: #{discrimination_loss3.1} parent=1 // pred_fallthru
      _
    // Predicated region
    $region34: #{discrimination_loss3.1} parent=1 // pred_check
      _
    $region35: #{discrimination_loss3.1} parent=1 // pred_check_branch
      %870 = sbr.rel (0) target = $region37
    $region36: #{discrimination_loss3.1} parent=1 // pred_region
      %s872 = ssub.s32 16, 16
      %873 = vsyncadd [#allocation6], %s872
      %s875 = sshll.u32 [#allocation7], 4
      %s876 = int_to_ptr.vmem [resolvable:$true] %s875
      %878 = dma.vmem_to_hbm [thread:$0]  %s876, 16, %s5, [#allocation6]
    $region37: #{discrimination_loss3.1} parent=1 // pred_fallthru
      _
    // Predicated region
    $region38: #{discrimination_loss3.1} parent=1 // pred_check
      _
    $region39: #{discrimination_loss3.1} parent=1 // pred_check_branch
      %880 = sbr.rel (0) target = $region41
    $region40: #{discrimination_loss3.1} parent=1 // pred_region
      %881 = dma.done [#allocation6], 16
    $region41: #{discrimination_loss3.1} parent=1 // pred_fallthru
      _
    %882 = vsyncpa [#allocation5], 1
    %883 = vsyncpa [#allocation6], 1

</llo_original>
